<compile_context>
chip_gen: v7x
topology: tpu7x:2x2x1
jax: 0.10.0
libtpu: 0.0.40
codegen_flags: <defaults>
</compile_context>

<pallas_src>
import jax
import jax.numpy as jnp
from jax.experimental import pallas as pl
from jax.experimental.pallas import tpu as pltpu


def _round_up(x, m):
    return ((x + m - 1) // m) * m


def gcn_kernel(adj_ref, feat_ref, wt_ref, b_ref, out_ref, acc_ref):
    k = pl.program_id(1)

    @pl.when(k == 0)
    def _():
        acc_ref[...] = jnp.zeros_like(acc_ref)

    # Linear first (reassociated): z = feat_tile @ W^T_pad  -> [tk, f_pad]
    z = jnp.dot(feat_ref[...], wt_ref[...], preferred_element_type=jnp.float32)
    # Aggregation: acc += A_tile @ z   (adj is bf16 0/1 -> exact after the cast)
    acc_ref[...] += jnp.dot(
        adj_ref[...].astype(jnp.float32), z, preferred_element_type=jnp.float32
    )

    @pl.when(k == pl.num_programs(1) - 1)
    def _():
        # Bias added exactly once, in the finalize step (lane-dense store).
        out_ref[...] = (acc_ref[...] + b_ref[...]).astype(out_ref.dtype)


def gcn_layer(adj, feat, weight, bias, *, tm=256, tk=256):
    """adj: [N, N] (0/1), feat: [N, F_in], weight: [F_out, F_in], bias: [F_out]."""
    n, f_in = feat.shape
    f_out = weight.shape[0]

    # Lane-dense output width (>= 128, multiple of 128).
    f_pad = _round_up(max(f_out, 128), 128)
    n_rows = _round_up(n, tm)
    n_cols = _round_up(n, tk)

    # bf16 adjacency: entries are 0/1 so the cast is exact; halves HBM bytes.
    adj_p = (
        jnp.zeros((n_rows, n_cols), jnp.bfloat16)
        .at[:n, :n]
        .set(adj.astype(jnp.bfloat16))
    )
    feat_p = jnp.zeros((n_cols, f_in), feat.dtype).at[:n, :].set(feat)
    # Zero-pad W^T and bias out to f_pad lanes (sliced off after the call).
    w_t = (
        jnp.zeros((f_in, f_pad), jnp.float32)
        .at[:, :f_out]
        .set(weight.T.astype(jnp.float32))
    )
    b2d = jnp.zeros((1, f_pad), jnp.float32).at[:, :f_out].set(bias.astype(jnp.float32))

    grid = (n_rows // tm, n_cols // tk)

    flops = 2 * n_rows * n_cols * f_pad + 2 * grid[0] * n_cols * f_in * f_pad
    bytes_accessed = (
        n_rows * n_cols * 2                 # bf16 adjacency, read once
        + grid[0] * n_cols * f_in * 4       # feat tiles re-read per row tile
        + n_rows * f_pad * 4                # lane-dense output
        + f_in * f_pad * 4 + f_pad * 4      # resident W^T and bias
    )

    out = pl.pallas_call(
        gcn_kernel,
        out_shape=jax.ShapeDtypeStruct((n_rows, f_pad), feat.dtype),
        grid=grid,
        in_specs=[
            pl.BlockSpec((tm, tk), lambda i, k: (i, k)),        # adjacency tile
            pl.BlockSpec((tk, f_in), lambda i, k: (k, 0)),      # feat contraction tile
            pl.BlockSpec((f_in, f_pad), lambda i, k: (0, 0)),   # W^T (resident)
            pl.BlockSpec((1, f_pad), lambda i, k: (0, 0)),      # bias (resident)
        ],
        out_specs=pl.BlockSpec((tm, f_pad), lambda i, k: (i, 0)),
        scratch_shapes=[pltpu.VMEM((tm, f_pad), jnp.float32)],
        compiler_params=pltpu.CompilerParams(
            dimension_semantics=("parallel", "arbitrary"),
            # ~1 MiB actually used; stays far inside v7x's 64 MiB physical VMEM.
            vmem_limit_bytes=32 * 1024 * 1024,
        ),
        cost_estimate=pl.CostEstimate(
            flops=int(flops),
            transcendentals=0,
            bytes_accessed=int(bytes_accessed),
        ),
    )(adj_p, feat_p, w_t, b2d)

    return out[:n, :f_out]


if __name__ == "__main__":
    # Small synthetic graph consistent with the module's forward (num_parts == 1).
    N = 512        # number of nodes in the (local) subgraph -> 2x2 grid of 256 tiles
    F_IN = 32      # in_feats
    F_OUT = 16     # out_feats

    key = jax.random.PRNGKey(0)
    k_adj, k_feat = jax.random.split(key)

    # Dense adjacency: A[v, u] = 1 iff edge u -> v (deterministic random graph).
    adj = jax.random.bernoulli(k_adj, p=0.1, shape=(N, N)).astype(jnp.float32)
    feat = jax.random.normal(k_feat, (N, F_IN), dtype=jnp.float32)

    # Parameters: nn.Linear(in_feats, out_feats) with constant_ init = 1.
    weight = jnp.ones((F_OUT, F_IN), dtype=jnp.float32)
    bias = jnp.ones((F_OUT,), dtype=jnp.float32)

    out = gcn_layer(adj, feat, weight, bias)
    out = jax.block_until_ready(out)

    # Pure-JAX reference of the hot path (module ordering: aggregate, then linear).
    ref = (adj @ feat) @ weight.T + bias
    assert out.shape == (N, F_OUT)
    # Reassociation only changes f32 summation order; bf16 adjacency is exact.
    assert jnp.allclose(out, ref, atol=1e-3, rtol=1e-4), "mismatch vs reference"

    print("KERNEL_OK")
</pallas_src>

<mosaic_0001>
module attributes {stable_mosaic.version = 11 : i64} {
  func.func @gcn_kernel(%arg0: i32, %arg1: i32, %arg2: memref<256x256xbf16, #tpu.memory_space<vmem>>, %arg3: memref<256x32xf32, #tpu.memory_space<vmem>>, %arg4: memref<32x128xf32, #tpu.memory_space<vmem>>, %arg5: memref<1x128xf32, #tpu.memory_space<vmem>>, %arg6: memref<256x128xf32, #tpu.memory_space<vmem>>, %arg7: memref<256x128xf32, #tpu.memory_space<vmem>>) attributes {dimension_semantics = [#tpu.dimension_semantics<parallel>, #tpu.dimension_semantics<arbitrary>], iteration_bounds = array<i64: 2, 2>, scalar_prefetch = 0 : i64, scratch_operands = 1 : i64, tpu.core_type = #tpu.core_type<tc>, window_params = [{transform_indices = @transform_0, window_bounds = array<i64: 256, 256>}, {transform_indices = @transform_1, window_bounds = array<i64: 256, 32>}, {pipeline_mode = #tpu.pipeline_mode<synchronous>, transform_indices = @transform_2, window_bounds = array<i64: 32, 128>}, {pipeline_mode = #tpu.pipeline_mode<synchronous>, transform_indices = @transform_3, window_bounds = array<i64: 1, 128>}, {transform_indices = @transform_4, window_bounds = array<i64: 256, 128>}]} {
    %c0_i32 = arith.constant 0 : i32
    %0 = arith.cmpi eq, %arg1, %c0_i32 : i32
    %1 = arith.extui %0 : i1 to i32
    %c0_i32_0 = arith.constant 0 : i32
    %2 = arith.cmpi ne, %1, %c0_i32_0 : i32
    scf.if %2 {
      %cst_12 = arith.constant 0.000000e+00 : f32
      %15 = vector.broadcast %cst_12 : f32 to vector<256x128xf32>
      %c0_13 = arith.constant 0 : index
      %c0_14 = arith.constant 0 : index
      %16 = vector.load %arg7[%c0_13, %c0_14] : memref<256x128xf32, #tpu.memory_space<vmem>>, vector<256x128xf32>
      tpu.vector_store %arg7[%c0_13, %c0_14], %15 {strides = array<i32>} : memref<256x128xf32, #tpu.memory_space<vmem>>, vector<256x128xf32>,
    } else {
    }
    %c0 = arith.constant 0 : index
    %c0_1 = arith.constant 0 : index
    %3 = vector.load %arg3[%c0, %c0_1] : memref<256x32xf32, #tpu.memory_space<vmem>>, vector<256x32xf32>
    %c0_2 = arith.constant 0 : index
    %c0_3 = arith.constant 0 : index
    %4 = vector.load %arg4[%c0_2, %c0_3] : memref<32x128xf32, #tpu.memory_space<vmem>>, vector<32x128xf32>
    %cst = arith.constant dense<0.000000e+00> : vector<256x128xf32>
    %5 = tpu.matmul %3, %4, %cst {dimension_numbers = #tpu.dot_dimension_numbers<[1], [0], [0], [1], [0, 0, 1, 1], [], []>} : vector<256x32xf32>, vector<32x128xf32>, vector<256x128xf32> -> vector<256x128xf32>
    %c0_4 = arith.constant 0 : index
    %c0_5 = arith.constant 0 : index
    %6 = vector.load %arg7[%c0_4, %c0_5] : memref<256x128xf32, #tpu.memory_space<vmem>>, vector<256x128xf32>
    %c0_6 = arith.constant 0 : index
    %c0_7 = arith.constant 0 : index
    %7 = vector.load %arg2[%c0_6, %c0_7] : memref<256x256xbf16, #tpu.memory_space<vmem>>, vector<256x256xbf16>
    %8 = arith.extf %7 : vector<256x256xbf16> to vector<256x256xf32>
    %cst_8 = arith.constant dense<0.000000e+00> : vector<256x128xf32>
    %9 = tpu.matmul %8, %5, %cst_8 {dimension_numbers = #tpu.dot_dimension_numbers<[1], [0], [0], [1], [0, 0, 1, 1], [], []>} : vector<256x256xf32>, vector<256x128xf32>, vector<256x128xf32> -> vector<256x128xf32>
    %10 = arith.addf %6, %9 : vector<256x128xf32>
    %c0_9 = arith.constant 0 : index
    %c0_10 = arith.constant 0 : index
    %11 = vector.load %arg7[%c0_9, %c0_10] : memref<256x128xf32, #tpu.memory_space<vmem>>, vector<256x128xf32>
    tpu.vector_store %arg7[%c0_9, %c0_10], %10 {strides = array<i32>} : memref<256x128xf32, #tpu.memory_space<vmem>>, vector<256x128xf32>,
    %c1_i32 = arith.constant 1 : i32
    %12 = arith.cmpi eq, %arg1, %c1_i32 : i32
    %13 = arith.extui %12 : i1 to i32
    %c0_i32_11 = arith.constant 0 : i32
    %14 = arith.cmpi ne, %13, %c0_i32_11 : i32
    scf.if %14 {
      %c0_12 = arith.constant 0 : index
      %c0_13 = arith.constant 0 : index
      %15 = vector.load %arg7[%c0_12, %c0_13] : memref<256x128xf32, #tpu.memory_space<vmem>>, vector<256x128xf32>
      %c0_14 = arith.constant 0 : index
      %c0_15 = arith.constant 0 : index
      %16 = vector.load %arg5[%c0_14, %c0_15] : memref<1x128xf32, #tpu.memory_space<vmem>>, vector<1x128xf32>
      %17 = vector.broadcast %16 : vector<1x128xf32> to vector<256x128xf32>
      %18 = arith.addf %15, %17 : vector<256x128xf32>
      %c0_16 = arith.constant 0 : index
      %c0_17 = arith.constant 0 : index
      %19 = vector.load %arg6[%c0_16, %c0_17] : memref<256x128xf32, #tpu.memory_space<vmem>>, vector<256x128xf32>
      tpu.vector_store %arg6[%c0_16, %c0_17], %18 {strides = array<i32>} : memref<256x128xf32, #tpu.memory_space<vmem>>, vector<256x128xf32>,
    } else {
    }
    return
  }
  func.func @transform_0(%arg0: i32, %arg1: i32) -> (i32, i32) {
    %c0_i32 = arith.constant 0 : i32
    return %arg0, %arg1 : i32, i32
  }
  func.func @transform_1(%arg0: i32, %arg1: i32) -> (i32, i32) {
    %c0_i32 = arith.constant 0 : i32
    %c0_i32_0 = arith.constant 0 : i32
    return %arg1, %c0_i32 : i32, i32
  }
  func.func @transform_2(%arg0: i32, %arg1: i32) -> (i32, i32) {
    %c0_i32 = arith.constant 0 : i32
    %c0_i32_0 = arith.constant 0 : i32
    %c0_i32_1 = arith.constant 0 : i32
    return %c0_i32, %c0_i32_0 : i32, i32
  }
  func.func @transform_3(%arg0: i32, %arg1: i32) -> (i32, i32) {
    %c0_i32 = arith.constant 0 : i32
    %c0_i32_0 = arith.constant 0 : i32
    %c0_i32_1 = arith.constant 0 : i32
    return %c0_i32, %c0_i32_0 : i32, i32
  }
  func.func @transform_4(%arg0: i32, %arg1: i32) -> (i32, i32) {
    %c0_i32 = arith.constant 0 : i32
    %c0_i32_0 = arith.constant 0 : i32
    return %arg0, %c0_i32 : i32, i32
  }
}

</mosaic_0001>

<llo_original>
// kernel: tpu_custom_call.1
$region0: #{tpu_custom_call.1}
  #allocation0 [shape = 'u32[]', space=smem, size = 0x4, offset = 0x4, fixed_abs, tag = 'smem constant byte address 0x4 - core index']
  #allocation1 [shape = 'u32[144,128]{1,0:T(1,128)}', space=vmem, size = 0x12000, scoped, tag = 'internal scratch']
  #allocation2 [shape = 'f32[256,128]{1,0:T(8,128)}', space=vmem, size = 0x20000, scoped, tag = 'scratch operand']
  %s0 = inlined_call_operand.hbm [shape: bf16[512,512], index: 0, kind: input, shape index: {}]
  %s1 = inlined_call_operand.vmem [shape: f32[512,32], index: 1, kind: input, shape index: {}]
  %s2 = inlined_call_operand.vmem [shape: f32[32,128], index: 2, kind: input, shape index: {}]
  %s3 = inlined_call_operand.vmem [shape: f32[1,128], index: 3, kind: input, shape index: {}]
  %s4 = inlined_call_operand.hbm [shape: f32[512,128], index: 4, kind: output, shape index: {}]
  %s5 = sld [smem:[#allocation0]]
  $region61: #{tpu_custom_call.1} parent=0
    _
  %s7 = ssub.s32 1, %s5
  %s8 = scalar_select 0, %s7, %s5
  $region1: #{tpu_custom_call.1} parent=0
    #allocation3 [shape = 'u8[262144]{0}', space=vmem, size = 0x40000, scoped, tag = 'input window, operand 0']
    #allocation4 [shape = 's32[2]{0}', space=sflag, size = 0x8, scoped, tag = 'scoped memory for tpu_custom_call.1']
    #allocation5 [shape = 's32[2]{0}', space=sflag, size = 0x8, scoped, tag = 'scoped memory for tpu_custom_call.1']
    #allocation6 [shape = 'u8[262144]{0}', space=vmem, size = 0x40000, scoped, tag = 'output window, operand 0']
    %9 = vsyncpa [#allocation4], 0
    %s10 = scalar_lea.sflag [#allocation4], 1
    %11 = vsyncpa %s10, 0
    %12 = vsyncpa [#allocation5], 0
    %s13 = scalar_lea.sflag [#allocation5], 1
    %14 = vsyncpa %s13, 0
    loop: start=0, step=1, limit=6
    $region2: #{tpu_custom_call.1} parent=1 // loop_pre_header
      _
    $region3: #{tpu_custom_call.1} parent=1 // loop_header
      %s16 = sphi 0, %s20
      %p17 = scmp.ge.s32.totalorder %s16, 6
      %s23 = sphi 0, %s35
      %s24 = sphi 0, %s31
      %s25 = sphi 0, %s23
      %s26 = sphi 0, %s24
      %s27 = sphi 0, %s25
      %s28 = sphi 0, %s26
      %s40 = sphi 0, %s42
      %s43 = sphi 0, %s40
      %s44 = sphi 0, %s43
      %s60 = sphi 0, %s44
      %s66 = sphi 0, %s68
      %s69 = sphi 0, %s66
      %s70 = sphi 0, %s69
      %s86 = sphi 0, %s70
      %s90 = sphi 0, %s90
      %s92 = sphi 0, %s90
      %s93 = sphi 0, %s92
      %s107 = sphi 0, %s93
      %s111 = sphi 0, %s111
      %s113 = sphi 0, %s111
      %s114 = sphi 0, %s113
      %s128 = sphi 0, %s114
      %s134 = sphi 0, %s136
      %s137 = sphi 0, %s134
      %s138 = sphi 0, %s137
      %s154 = sphi 0, %s138
    $region4: #{tpu_custom_call.1} parent=1 // loop_header_branch
      %19 = sbr.rel (%p17) target = $region8
    $region5: #{tpu_custom_call.1} parent=1 // loop_body
      %s21 = ssub.s32 %s16, 1
      %s22 = ssub.s32 %s16, 2
      %s29 = sadd.s32 1, %s24
      %p30 = scmp.ge.s32.totalorder %s29, 2
      %s31 = scalar_select %p30, 0, %s29
      %s32 = sadd.s32 1, %s23
      %s33 = scalar_select %p30, %s32, %s23
      %p34 = scmp.ge.s32.totalorder %s33, 2
      %s35 = scalar_select %p34, 0, %s33
      %s36 = ssub.s32 %s23, %s35
      %s37 = ssub.s32 %s24, %s31
      %s38 = sor.u32 %s36, %s37
      %p39 = scmp.eq.s32.totalorder %s38, 0
      %s41 = sadd.s32 %s40, 1
      %s42 = scalar_select %p39, %s40, %s41
      %p45 = pneg %p39
      %p46 = scmp.eq.s32.totalorder %s16, 3
      %p47 = por %p45, %p46
      %p48 = scmp.ne.s32.totalorder %s40, %s43
      %p49 = scmp.eq.s32.totalorder %s16, 0
      %p50 = por %p48, %p49
      %p51 = scmp.ne.s32.totalorder %s40, %s43
      %p52 = scmp.eq.s32.totalorder %s21, 3
      %p53 = por %p51, %p52
      %p54 = scmp.ne.s32.totalorder %s43, %s44
      %p55 = scmp.eq.s32.totalorder %s21, 0
      %p56 = por %p54, %p55
      %p57 = scmp.ne.s32.totalorder %s43, %s44
      %p58 = scmp.eq.s32.totalorder %s22, 3
      %p59 = por %p57, %p58
      %p61 = scmp.ne.s32.totalorder %s44, %s60
      %p62 = scmp.eq.s32.totalorder %s22, 0
      %p63 = por %p61, %p62
      %s64 = ssub.s32 %s24, %s31
      %p65 = scmp.eq.s32.totalorder %s64, 0
      %s67 = sadd.s32 %s66, 1
      %s68 = scalar_select %p65, %s66, %s67
      %p71 = pneg %p65
      %p72 = scmp.eq.s32.totalorder %s16, 3
      %p73 = por %p71, %p72
      %p74 = scmp.ne.s32.totalorder %s66, %s69
      %p75 = scmp.eq.s32.totalorder %s16, 0
      %p76 = por %p74, %p75
      %p77 = scmp.ne.s32.totalorder %s66, %s69
      %p78 = scmp.eq.s32.totalorder %s21, 3
      %p79 = por %p77, %p78
      %p80 = scmp.ne.s32.totalorder %s69, %s70
      %p81 = scmp.eq.s32.totalorder %s21, 0
      %p82 = por %p80, %p81
      %p83 = scmp.ne.s32.totalorder %s69, %s70
      %p84 = scmp.eq.s32.totalorder %s22, 3
      %p85 = por %p83, %p84
      %p87 = scmp.ne.s32.totalorder %s70, %s86
      %p88 = scmp.eq.s32.totalorder %s22, 0
      %p89 = por %p87, %p88
      %s91 = sadd.s32 %s90, 1
      %p94 = scmp.eq.s32.totalorder %s16, 3
      %p95 = scmp.ne.s32.totalorder %s90, %s92
      %p96 = scmp.eq.s32.totalorder %s16, 0
      %p97 = por %p95, %p96
      %p98 = scmp.ne.s32.totalorder %s90, %s92
      %p99 = scmp.eq.s32.totalorder %s21, 3
      %p100 = por %p98, %p99
      %p101 = scmp.ne.s32.totalorder %s92, %s93
      %p102 = scmp.eq.s32.totalorder %s21, 0
      %p103 = por %p101, %p102
      %p104 = scmp.ne.s32.totalorder %s92, %s93
      %p105 = scmp.eq.s32.totalorder %s22, 3
      %p106 = por %p104, %p105
      %p108 = scmp.ne.s32.totalorder %s93, %s107
      %p109 = scmp.eq.s32.totalorder %s22, 0
      %p110 = por %p108, %p109
      %s112 = sadd.s32 %s111, 1
      %p115 = scmp.eq.s32.totalorder %s16, 3
      %p116 = scmp.ne.s32.totalorder %s111, %s113
      %p117 = scmp.eq.s32.totalorder %s16, 0
      %p118 = por %p116, %p117
      %p119 = scmp.ne.s32.totalorder %s111, %s113
      %p120 = scmp.eq.s32.totalorder %s21, 3
      %p121 = por %p119, %p120
      %p122 = scmp.ne.s32.totalorder %s113, %s114
      %p123 = scmp.eq.s32.totalorder %s21, 0
      %p124 = por %p122, %p123
      %p125 = scmp.ne.s32.totalorder %s113, %s114
      %p126 = scmp.eq.s32.totalorder %s22, 3
      %p127 = por %p125, %p126
      %p129 = scmp.ne.s32.totalorder %s114, %s128
      %p130 = scmp.eq.s32.totalorder %s22, 0
      %p131 = por %p129, %p130
      %s132 = ssub.s32 %s23, %s35
      %p133 = scmp.eq.s32.totalorder %s132, 0
      %s135 = sadd.s32 %s134, 1
      %s136 = scalar_select %p133, %s134, %s135
      %p139 = pneg %p133
      %p140 = scmp.eq.s32.totalorder %s16, 3
      %p141 = por %p139, %p140
      %p142 = scmp.ne.s32.totalorder %s134, %s137
      %p143 = scmp.eq.s32.totalorder %s16, 0
      %p144 = por %p142, %p143
      %p145 = scmp.ne.s32.totalorder %s134, %s137
      %p146 = scmp.eq.s32.totalorder %s21, 3
      %p147 = por %p145, %p146
      %p148 = scmp.ne.s32.totalorder %s137, %s138
      %p149 = scmp.eq.s32.totalorder %s21, 0
      %p150 = por %p148, %p149
      %p151 = scmp.ne.s32.totalorder %s137, %s138
      %p152 = scmp.eq.s32.totalorder %s22, 3
      %p153 = por %p151, %p152
      %p155 = scmp.ne.s32.totalorder %s138, %s154
      %p156 = scmp.eq.s32.totalorder %s22, 0
      %p157 = por %p155, %p156
      %p158 = scmp.le.s32.totalorder 1, %s16
      %p159 = scmp.lt.s32.totalorder %s16, 5
      %p160 = pnand %p158, %p159
      %p161 = pneg %p160
      // Predicated region
      $region9: #{tpu_custom_call.1} parent=5 // pred_check
        _
      $region10: #{tpu_custom_call.1} parent=5 // pred_check_branch
        %163 = sbr.rel (%p160) target = $region12
      $region11: #{tpu_custom_call.1} parent=5 // pred_region
        %s164 = ssub.s32 %s16, 1
        // Predicated region
        $region13: #{tpu_custom_call.1} parent=11 // pred_check
          %p165 = pneg %p103
        $region14: #{tpu_custom_call.1} parent=11 // pred_check_branch
          %167 = sbr.rel (%p165) target = $region16
        $region15: #{tpu_custom_call.1} parent=11 // pred_region
          _
        $region16: #{tpu_custom_call.1} parent=11 // pred_fallthru
          _
        // Predicated region
        $region17: #{tpu_custom_call.1} parent=11 // pred_check
          %p168 = pneg %p124
        $region18: #{tpu_custom_call.1} parent=11 // pred_check_branch
          %170 = sbr.rel (%p168) target = $region20
        $region19: #{tpu_custom_call.1} parent=11 // pred_region
          _
        $region20: #{tpu_custom_call.1} parent=11 // pred_fallthru
          _
      $region12: #{tpu_custom_call.1} parent=5 // pred_fallthru
        _
      %p171 = scmp.lt.s32.totalorder %s16, 4
      // Predicated region
      $region21: #{tpu_custom_call.1} parent=5 // pred_check
        %p172 = pneg %p171
      $region22: #{tpu_custom_call.1} parent=5 // pred_check_branch
        %174 = sbr.rel (%p172) target = $region24
      $region23: #{tpu_custom_call.1} parent=5 // pred_region
        // Predicated region
        $region25: #{tpu_custom_call.1} parent=23 // pred_check
          %p175 = pneg %p50
        $region26: #{tpu_custom_call.1} parent=23 // pred_check_branch
          %177 = sbr.rel (%p175) target = $region28
        $region27: #{tpu_custom_call.1} parent=23 // pred_region
          %s178 = sand.u32 %s40, 1
          %s179 = scalar_lea.sflag [#allocation4], %s178
          %s180 = sand.u32 %s40, 1
          %s181 = smul.addr %s180, 256
          %s182 = scalar_lea.vmem [#allocation3], %s181
          %s183 = smul.u32 32, %s23
          %s184 = smul.u32 2, %s24
          %s186 = ssub.s32 4096, 4096
          %187 = vsyncadd %s179, %s186
          %s188 = smul.addr %s183, 4
          %s189 = sadd.s32 %s184, %s188
          %s190 = smul.addr %s189, 64
          %s191 = scalar_lea.hbm %s0, %s190
          %s192 = sshll.u32 %s182, 4
          %s193 = int_to_ptr.vmem [resolvable:$true] %s192
          %198 = dma.hbm_to_vmem [thread:$0]  %s191, 4096, %s193, %s179, 256, 128, 8
        $region28: #{tpu_custom_call.1} parent=23 // pred_fallthru
          _
        // Predicated region
        $region29: #{tpu_custom_call.1} parent=23 // pred_check
          %p199 = pneg %p76
        $region30: #{tpu_custom_call.1} parent=23 // pred_check_branch
          %201 = sbr.rel (%p199) target = $region32
        $region31: #{tpu_custom_call.1} parent=23 // pred_region
          %s202 = smul.u32 32, %s24
          %p203 = scmp.lt.s32.totalorder %s202, 63
          %s204 = scalar_select %p203, %s202, 63
          %s205 = smul.addr %s204, 8
          %s206 = scalar_lea.vmem %s1, %s205
          %s207 = smul.u32 32, %s24
        $region32: #{tpu_custom_call.1} parent=23 // pred_fallthru
          _
      $region24: #{tpu_custom_call.1} parent=5 // pred_fallthru
        _
      %p208 = scmp.le.s32.totalorder 1, %s16
      %p209 = scmp.lt.s32.totalorder %s16, 5
      %p210 = pnand %p208, %p209
      %p211 = pneg %p210
      // Predicated region
      $region33: #{tpu_custom_call.1} parent=5 // pred_check
        _
      $region34: #{tpu_custom_call.1} parent=5 // pred_check_branch
        %213 = sbr.rel (%p210) target = $region36
      $region35: #{tpu_custom_call.1} parent=5 // pred_region
        %s214 = ssub.s32 %s16, 1
        %s215 = sand.u32 %s43, 1
        %s216 = scalar_lea.sflag [#allocation4], %s215
        %s217 = sand.u32 %s43, 1
        %s218 = smul.addr %s217, 256
        %s219 = scalar_lea.vmem [#allocation3], %s218
        // Predicated region
        $region37: #{tpu_custom_call.1} parent=35 // pred_check
          %p220 = pneg %p56
        $region38: #{tpu_custom_call.1} parent=35 // pred_check_branch
          %222 = sbr.rel (%p220) target = $region40
        $region39: #{tpu_custom_call.1} parent=35 // pred_region
          %223 = dma.done %s216, 4096
        $region40: #{tpu_custom_call.1} parent=35 // pred_fallthru
          _
        %s224 = sand.u32 %s43, 1
        %s225 = scalar_lea.sflag [#allocation4], %s224
        %s226 = sand.u32 %s43, 1
        %s227 = smul.addr %s226, 256
        %s228 = scalar_lea.vmem [#allocation3], %s227
        %p229 = pneg %p56
        %p230 = pneg %p53
        %s231 = smul.u32 32, %s26
        %p232 = scmp.lt.s32.totalorder %s231, 63
        %s233 = scalar_select %p232, %s231, 63
        %s234 = smul.addr %s233, 8
        %s235 = scalar_lea.vmem %s1, %s234
        %p236 = pneg %p82
        %p237 = pneg %p79
        %p238 = pneg %p103
        %p239 = pneg %p100
        %p240 = pneg %p124
        %p241 = pneg %p121
        %p242 = pneg %p150
        %p243 = pneg %p147
        %s244 = sand.u32 %s137, 1
        %s245 = scalar_lea.sflag [#allocation5], %s244
        %s246 = sand.u32 %s137, 1
        %s247 = smul.addr %s246, 256
        %s248 = scalar_lea.vmem [#allocation6], %s247
        %s249 = smul.u32 32, %s25
        %s250 = smul.u32 2, %s26
        %s251 = smul.u32 32, %s26
        %p252 = scmp.lt.s32.totalorder %s251, 63
        %s253 = scalar_select %p252, %s251, 63
        %s254 = smul.addr %s253, 8
        %s255 = scalar_lea.vmem %s1, %s254
        %s256 = smul.u32 32, %s26
        %s257 = smul.u32 32, %s25
        %p258 = scmp.eq.s32.totalorder %s26, 0
        // Predicated region
        $region41: #{tpu_custom_call.1} parent=35 // pred_check
          %p259 = pneg %p258
        $region42: #{tpu_custom_call.1} parent=35 // pred_check_branch
          %261 = sbr.rel (%p259) target = $region44
        $region43: #{tpu_custom_call.1} parent=35 // pred_region
          %262 = vst [vmem:[#allocation2] sm:$0xff] 0.0
          %263 = vst [vmem:[#allocation2 + $0x8] sm:$0xff] 0.0
          %264 = vst [vmem:[#allocation2 + $0x10] sm:$0xff] 0.0
          %265 = vst [vmem:[#allocation2 + $0x18] sm:$0xff] 0.0
          %266 = vst [vmem:[#allocation2 + $0x20] sm:$0xff] 0.0
          %267 = vst [vmem:[#allocation2 + $0x28] sm:$0xff] 0.0
          %268 = vst [vmem:[#allocation2 + $0x30] sm:$0xff] 0.0
          %269 = vst [vmem:[#allocation2 + $0x38] sm:$0xff] 0.0
          %270 = vst [vmem:[#allocation2 + $0x40] sm:$0xff] 0.0
          %271 = vst [vmem:[#allocation2 + $0x48] sm:$0xff] 0.0
          %272 = vst [vmem:[#allocation2 + $0x50] sm:$0xff] 0.0
          %273 = vst [vmem:[#allocation2 + $0x58] sm:$0xff] 0.0
          %274 = vst [vmem:[#allocation2 + $0x60] sm:$0xff] 0.0
          %275 = vst [vmem:[#allocation2 + $0x68] sm:$0xff] 0.0
          %276 = vst [vmem:[#allocation2 + $0x70] sm:$0xff] 0.0
          %277 = vst [vmem:[#allocation2 + $0x78] sm:$0xff] 0.0
          %278 = vst [vmem:[#allocation2 + $0x80] sm:$0xff] 0.0
          %279 = vst [vmem:[#allocation2 + $0x88] sm:$0xff] 0.0
          %280 = vst [vmem:[#allocation2 + $0x90] sm:$0xff] 0.0
          %281 = vst [vmem:[#allocation2 + $0x98] sm:$0xff] 0.0
          %282 = vst [vmem:[#allocation2 + $0xa0] sm:$0xff] 0.0
          %283 = vst [vmem:[#allocation2 + $0xa8] sm:$0xff] 0.0
          %284 = vst [vmem:[#allocation2 + $0xb0] sm:$0xff] 0.0
          %285 = vst [vmem:[#allocation2 + $0xb8] sm:$0xff] 0.0
          %286 = vst [vmem:[#allocation2 + $0xc0] sm:$0xff] 0.0
          %287 = vst [vmem:[#allocation2 + $0xc8] sm:$0xff] 0.0
          %288 = vst [vmem:[#allocation2 + $0xd0] sm:$0xff] 0.0
          %289 = vst [vmem:[#allocation2 + $0xd8] sm:$0xff] 0.0
          %290 = vst [vmem:[#allocation2 + $0xe0] sm:$0xff] 0.0
          %291 = vst [vmem:[#allocation2 + $0xe8] sm:$0xff] 0.0
          %292 = vst [vmem:[#allocation2 + $0xf0] sm:$0xff] 0.0
          %293 = vst [vmem:[#allocation2 + $0xf8] sm:$0xff] 0.0
        $region44: #{tpu_custom_call.1} parent=35 // pred_fallthru
          _
        %v294 = vld [vmem:[%s255] sm:$0xff]
        %v295 = vld [vmem:[%s255 + $0x8] sm:$0xff]
        %v296 = vld [vmem:[%s255 + $0x10] sm:$0xff]
        %v297 = vld [vmem:[%s255 + $0x18] sm:$0xff]
        %v298 = vld [vmem:[%s255 + $0x20] sm:$0xff]
        %v299 = vld [vmem:[%s255 + $0x28] sm:$0xff]
        %v300 = vld [vmem:[%s255 + $0x30] sm:$0xff]
        %v301 = vld [vmem:[%s255 + $0x38] sm:$0xff]
        %v302 = vld [vmem:[%s255 + $0x40] sm:$0xff]
        %v303 = vld [vmem:[%s255 + $0x48] sm:$0xff]
        %v304 = vld [vmem:[%s255 + $0x50] sm:$0xff]
        %v305 = vld [vmem:[%s255 + $0x58] sm:$0xff]
        %v306 = vld [vmem:[%s255 + $0x60] sm:$0xff]
        %v307 = vld [vmem:[%s255 + $0x68] sm:$0xff]
        %v308 = vld [vmem:[%s255 + $0x70] sm:$0xff]
        %v309 = vld [vmem:[%s255 + $0x78] sm:$0xff]
        %v310 = vld [vmem:[%s255 + $0x80] sm:$0xff]
        %v311 = vld [vmem:[%s255 + $0x88] sm:$0xff]
        %v312 = vld [vmem:[%s255 + $0x90] sm:$0xff]
        %v313 = vld [vmem:[%s255 + $0x98] sm:$0xff]
        %v314 = vld [vmem:[%s255 + $0xa0] sm:$0xff]
        %v315 = vld [vmem:[%s255 + $0xa8] sm:$0xff]
        %v316 = vld [vmem:[%s255 + $0xb0] sm:$0xff]
        %v317 = vld [vmem:[%s255 + $0xb8] sm:$0xff]
        %v318 = vld [vmem:[%s255 + $0xc0] sm:$0xff]
        %v319 = vld [vmem:[%s255 + $0xc8] sm:$0xff]
        %v320 = vld [vmem:[%s255 + $0xd0] sm:$0xff]
        %v321 = vld [vmem:[%s255 + $0xd8] sm:$0xff]
        %v322 = vld [vmem:[%s255 + $0xe0] sm:$0xff]
        %v323 = vld [vmem:[%s255 + $0xe8] sm:$0xff]
        %v324 = vld [vmem:[%s255 + $0xf0] sm:$0xff]
        %v325 = vld [vmem:[%s255 + $0xf8] sm:$0xff]
        %v326 = vld [vmem:[%s2] sm:$0xff]
        %v327 = vld [vmem:[%s2 + $0x8] sm:$0xff]
        %v328 = vld [vmem:[%s2 + $0x10] sm:$0xff]
        %v329 = vld [vmem:[%s2 + $0x18] sm:$0xff]
        %vm330 = vcmask 261120
        %v332 = vsel %vm330, %v294, 0
        %v335 = vsel %vm330, %v295, 0
        %v338 = vsel %vm330, %v296, 0
        %v341 = vsel %vm330, %v297, 0
        %v344 = vsel %vm330, %v298, 0
        %v347 = vsel %vm330, %v299, 0
        %v350 = vsel %vm330, %v300, 0
        %v353 = vsel %vm330, %v301, 0
        %v356 = vsel %vm330, %v302, 0
        %v359 = vsel %vm330, %v303, 0
        %v362 = vsel %vm330, %v304, 0
        %v365 = vsel %vm330, %v305, 0
        %v368 = vsel %vm330, %v306, 0
        %v371 = vsel %vm330, %v307, 0
        %v374 = vsel %vm330, %v308, 0
        %v377 = vsel %vm330, %v309, 0
        %v380 = vsel %vm330, %v310, 0
        %v383 = vsel %vm330, %v311, 0
        %v386 = vsel %vm330, %v312, 0
        %v389 = vsel %vm330, %v313, 0
        %v392 = vsel %vm330, %v314, 0
        %v395 = vsel %vm330, %v315, 0
        %v398 = vsel %vm330, %v316, 0
        %v401 = vsel %vm330, %v317, 0
        %v404 = vsel %vm330, %v318, 0
        %v407 = vsel %vm330, %v319, 0
        %v410 = vsel %vm330, %v320, 0
        %v413 = vsel %vm330, %v321, 0
        %v416 = vsel %vm330, %v322, 0
        %v419 = vsel %vm330, %v323, 0
        %v422 = vsel %vm330, %v324, 0
        %v425 = vsel %vm330, %v325, 0
        %427 = vmatprep.subr.mxu0 0.0
        %428 = vmatpush1.msra.mxu0 %v326
        %429 = vmatprep.subr.mxu0 0.0
        %430 = vmatpush1.msra.mxu0 %v327
        %431 = vmatprep.subr.mxu0 0.0
        %432 = vmatpush1.msra.mxu0 %v328
        %433 = vmatprep.subr.mxu0 0.0
        %434 = vmatpush1.msra.mxu0 %v329
        %435 = vmatprep.subr.mxu0 0.0
        %436 = vmatpush1.msra.mxu0 0.0
        %437 = vmatprep.subr.mxu0 0.0
        %438 = vmatpush1.msra.mxu0 0.0
        %439 = vmatprep.subr.mxu0 0.0
        %440 = vmatpush1.msra.mxu0 0.0
        %441 = vmatprep.subr.mxu0 0.0
        %442 = vmatpush1.msra.mxu0 0.0
        %443 = vmatprep.subr.mxu0 0.0
        %444 = vmatpush1.msra.mxu0 0.0
        %445 = vmatprep.subr.mxu0 0.0
        %446 = vmatpush1.msra.mxu0 0.0
        %447 = vmatprep.subr.mxu0 0.0
        %448 = vmatpush1.msra.mxu0 0.0
        %449 = vmatprep.subr.mxu0 0.0
        %450 = vmatpush1.msra.mxu0 0.0
        %451 = vmatprep.subr.mxu0 0.0
        %452 = vmatpush1.msra.mxu0 0.0
        %453 = vmatprep.subr.mxu0 0.0
        %454 = vmatpush1.msra.mxu0 0.0
        %455 = vmatprep.subr.mxu0 0.0
        %456 = vmatpush1.msra.mxu0 0.0
        %457 = vmatprep.subr.mxu0 0.0
        %458 = vmatpush1.msra.mxu0 0.0
        %459 = vmatprep.subr.mxu0 0.0
        %460 = vmatpush1.msra.mxu0 0.0
        %461 = vmatprep.subr.mxu0 0.0
        %462 = vmatpush1.msra.mxu0 0.0
        %463 = vmatprep.subr.mxu0 0.0
        %464 = vmatpush1.msra.mxu0 0.0
        %465 = vmatprep.subr.mxu0 0.0
        %466 = vmatpush1.msra.mxu0 0.0
        %467 = vmatprep.subr.mxu0 0.0
        %468 = vmatpush1.msra.mxu0 0.0
        %469 = vmatprep.subr.mxu0 0.0
        %470 = vmatpush1.msra.mxu0 0.0
        %471 = vmatprep.subr.mxu0 0.0
        %472 = vmatpush1.msra.mxu0 0.0
        %473 = vmatprep.subr.mxu0 0.0
        %474 = vmatpush1.msra.mxu0 0.0
        %475 = vmatprep.subr.mxu0 0.0
        %476 = vmatpush1.msra.mxu0 0.0
        %477 = vmatprep.subr.mxu0 0.0
        %478 = vmatpush1.msra.mxu0 0.0
        %479 = vmatprep.subr.mxu0 0.0
        %480 = vmatpush1.msra.mxu0 0.0
        %481 = vmatprep.subr.mxu0 0.0
        %482 = vmatpush1.msra.mxu0 0.0
        %483 = vmatprep.subr.mxu0 0.0
        %484 = vmatpush1.msra.mxu0 0.0
        %485 = vmatprep.subr.mxu0 0.0
        %486 = vmatpush1.msra.mxu0 0.0
        %487 = vmatprep.subr.mxu0 0.0
        %488 = vmatpush1.msra.mxu0 0.0
        %489 = vmatprep.subr.mxu0 0.0
        %490 = vmatpush1.msra.mxu0 0.0
        %491 = vmatprep.mubr.f32.mxu0 0.0
        %492 = vmatmul.mubr.f32.gmra.mrb[0].mxu0 %v332
        %v493 = vpop.f32.mrb[0].mxu0
        %v494 = vadd.f32 0.0, %v493
        %v495 = vpop.f32.mrb[0].mxu0
        %496 = vmatprep.mubr.f32.mxu0 0.0
        %497 = vmatmul.mubr.f32.gmra.mrb[0].mxu0 %v335
        %v498 = vpop.f32.mrb[0].mxu0
        %v499 = vadd.f32 0.0, %v498
        %v500 = vpop.f32.mrb[0].mxu0
        %501 = vmatprep.mubr.f32.mxu0 0.0
        %502 = vmatmul.mubr.f32.gmra.mrb[0].mxu0 %v338
        %v503 = vpop.f32.mrb[0].mxu0
        %v504 = vadd.f32 0.0, %v503
        %v505 = vpop.f32.mrb[0].mxu0
        %506 = vmatprep.mubr.f32.mxu0 0.0
        %507 = vmatmul.mubr.f32.gmra.mrb[0].mxu0 %v341
        %v508 = vpop.f32.mrb[0].mxu0
        %v509 = vadd.f32 0.0, %v508
        %v510 = vpop.f32.mrb[0].mxu0
        %511 = vmatprep.mubr.f32.mxu0 0.0
        %512 = vmatmul.mubr.f32.gmra.mrb[0].mxu0 %v344
        %v513 = vpop.f32.mrb[0].mxu0
        %v514 = vadd.f32 0.0, %v513
        %v515 = vpop.f32.mrb[0].mxu0
        %516 = vmatprep.mubr.f32.mxu0 0.0
        %517 = vmatmul.mubr.f32.gmra.mrb[0].mxu0 %v347
        %v518 = vpop.f32.mrb[0].mxu0
        %v519 = vadd.f32 0.0, %v518
        %v520 = vpop.f32.mrb[0].mxu0
        %521 = vmatprep.mubr.f32.mxu0 0.0
        %522 = vmatmul.mubr.f32.gmra.mrb[0].mxu0 %v350
        %v523 = vpop.f32.mrb[0].mxu0
        %v524 = vadd.f32 0.0, %v523
        %v525 = vpop.f32.mrb[0].mxu0
        %526 = vmatprep.mubr.f32.mxu0 0.0
        %527 = vmatmul.mubr.f32.gmra.mrb[0].mxu0 %v353
        %v528 = vpop.f32.mrb[0].mxu0
        %v529 = vadd.f32 0.0, %v528
        %v530 = vpop.f32.mrb[0].mxu0
        %531 = vmatprep.mubr.f32.mxu0 0.0
        %532 = vmatmul.mubr.f32.gmra.mrb[0].mxu0 %v356
        %v533 = vpop.f32.mrb[0].mxu0
        %v534 = vadd.f32 0.0, %v533
        %v535 = vpop.f32.mrb[0].mxu0
        %536 = vmatprep.mubr.f32.mxu0 0.0
        %537 = vmatmul.mubr.f32.gmra.mrb[0].mxu0 %v359
        %v538 = vpop.f32.mrb[0].mxu0
        %v539 = vadd.f32 0.0, %v538
        %v540 = vpop.f32.mrb[0].mxu0
        %541 = vmatprep.mubr.f32.mxu0 0.0
        %542 = vmatmul.mubr.f32.gmra.mrb[0].mxu0 %v362
        %v543 = vpop.f32.mrb[0].mxu0
        %v544 = vadd.f32 0.0, %v543
        %v545 = vpop.f32.mrb[0].mxu0
        %546 = vmatprep.mubr.f32.mxu0 0.0
        %547 = vmatmul.mubr.f32.gmra.mrb[0].mxu0 %v365
        %v548 = vpop.f32.mrb[0].mxu0
        %v549 = vadd.f32 0.0, %v548
        %v550 = vpop.f32.mrb[0].mxu0
        %551 = vmatprep.mubr.f32.mxu0 0.0
        %552 = vmatmul.mubr.f32.gmra.mrb[0].mxu0 %v368
        %v553 = vpop.f32.mrb[0].mxu0
        %v554 = vadd.f32 0.0, %v553
        %v555 = vpop.f32.mrb[0].mxu0
        %556 = vmatprep.mubr.f32.mxu0 0.0
        %557 = vmatmul.mubr.f32.gmra.mrb[0].mxu0 %v371
        %v558 = vpop.f32.mrb[0].mxu0
        %v559 = vadd.f32 0.0, %v558
        %v560 = vpop.f32.mrb[0].mxu0
        %561 = vmatprep.mubr.f32.mxu0 0.0
        %562 = vmatmul.mubr.f32.gmra.mrb[0].mxu0 %v374
        %v563 = vpop.f32.mrb[0].mxu0
        %v564 = vadd.f32 0.0, %v563
        %v565 = vpop.f32.mrb[0].mxu0
        %566 = vmatprep.mubr.f32.mxu0 0.0
        %567 = vmatmul.mubr.f32.gmra.mrb[0].mxu0 %v377
        %v568 = vpop.f32.mrb[0].mxu0
        %v569 = vadd.f32 0.0, %v568
        %v570 = vpop.f32.mrb[0].mxu0
        %571 = vmatprep.mubr.f32.mxu0 0.0
        %572 = vmatmul.mubr.f32.gmra.mrb[0].mxu0 %v380
        %v573 = vpop.f32.mrb[0].mxu0
        %v574 = vadd.f32 0.0, %v573
        %v575 = vpop.f32.mrb[0].mxu0
        %576 = vmatprep.mubr.f32.mxu0 0.0
        %577 = vmatmul.mubr.f32.gmra.mrb[0].mxu0 %v383
        %v578 = vpop.f32.mrb[0].mxu0
        %v579 = vadd.f32 0.0, %v578
        %v580 = vpop.f32.mrb[0].mxu0
        %581 = vmatprep.mubr.f32.mxu0 0.0
        %582 = vmatmul.mubr.f32.gmra.mrb[0].mxu0 %v386
        %v583 = vpop.f32.mrb[0].mxu0
        %v584 = vadd.f32 0.0, %v583
        %v585 = vpop.f32.mrb[0].mxu0
        %586 = vmatprep.mubr.f32.mxu0 0.0
        %587 = vmatmul.mubr.f32.gmra.mrb[0].mxu0 %v389
        %v588 = vpop.f32.mrb[0].mxu0
        %v589 = vadd.f32 0.0, %v588
        %v590 = vpop.f32.mrb[0].mxu0
        %591 = vmatprep.mubr.f32.mxu0 0.0
        %592 = vmatmul.mubr.f32.gmra.mrb[0].mxu0 %v392
        %v593 = vpop.f32.mrb[0].mxu0
        %v594 = vadd.f32 0.0, %v593
        %v595 = vpop.f32.mrb[0].mxu0
        %596 = vmatprep.mubr.f32.mxu0 0.0
        %597 = vmatmul.mubr.f32.gmra.mrb[0].mxu0 %v395
        %v598 = vpop.f32.mrb[0].mxu0
        %v599 = vadd.f32 0.0, %v598
        %v600 = vpop.f32.mrb[0].mxu0
        %601 = vmatprep.mubr.f32.mxu0 0.0
        %602 = vmatmul.mubr.f32.gmra.mrb[0].mxu0 %v398
        %v603 = vpop.f32.mrb[0].mxu0
        %v604 = vadd.f32 0.0, %v603
        %v605 = vpop.f32.mrb[0].mxu0
        %606 = vmatprep.mubr.f32.mxu0 0.0
        %607 = vmatmul.mubr.f32.gmra.mrb[0].mxu0 %v401
        %v608 = vpop.f32.mrb[0].mxu0
        %v609 = vadd.f32 0.0, %v608
        %v610 = vpop.f32.mrb[0].mxu0
        %611 = vmatprep.mubr.f32.mxu0 0.0
        %612 = vmatmul.mubr.f32.gmra.mrb[0].mxu0 %v404
        %v613 = vpop.f32.mrb[0].mxu0
        %v614 = vadd.f32 0.0, %v613
        %v615 = vpop.f32.mrb[0].mxu0
        %616 = vmatprep.mubr.f32.mxu0 0.0
        %617 = vmatmul.mubr.f32.gmra.mrb[0].mxu0 %v407
        %v618 = vpop.f32.mrb[0].mxu0
        %v619 = vadd.f32 0.0, %v618
        %v620 = vpop.f32.mrb[0].mxu0
        %621 = vmatprep.mubr.f32.mxu0 0.0
        %622 = vmatmul.mubr.f32.gmra.mrb[0].mxu0 %v410
        %v623 = vpop.f32.mrb[0].mxu0
        %v624 = vadd.f32 0.0, %v623
        %v625 = vpop.f32.mrb[0].mxu0
        %626 = vmatprep.mubr.f32.mxu0 0.0
        %627 = vmatmul.mubr.f32.gmra.mrb[0].mxu0 %v413
        %v628 = vpop.f32.mrb[0].mxu0
        %v629 = vadd.f32 0.0, %v628
        %v630 = vpop.f32.mrb[0].mxu0
        %631 = vmatprep.mubr.f32.mxu0 0.0
        %632 = vmatmul.mubr.f32.gmra.mrb[0].mxu0 %v416
        %v633 = vpop.f32.mrb[0].mxu0
        %v634 = vadd.f32 0.0, %v633
        %v635 = vpop.f32.mrb[0].mxu0
        %636 = vmatprep.mubr.f32.mxu0 0.0
        %637 = vmatmul.mubr.f32.gmra.mrb[0].mxu0 %v419
        %v638 = vpop.f32.mrb[0].mxu0
        %v639 = vadd.f32 0.0, %v638
        %v640 = vpop.f32.mrb[0].mxu0
        %641 = vmatprep.mubr.f32.mxu0 0.0
        %642 = vmatmul.mubr.f32.gmra.mrb[0].mxu0 %v422
        %v643 = vpop.f32.mrb[0].mxu0
        %v644 = vadd.f32 0.0, %v643
        %v645 = vpop.f32.mrb[0].mxu0
        %646 = vmatprep.mubr.f32.mxu0 0.0
        %647 = vmatmul.mubr.f32.gmra.mrb[0].mxu0 %v425
        %v648 = vpop.f32.mrb[0].mxu0
        %v649 = vadd.f32 0.0, %v648
        %v650 = vpop.f32.mrb[0].mxu0
        %651 = vdwg.mxu0
        %v652 = vld [vmem:[#allocation2] sm:$0xff]
        %v653 = vld [vmem:[#allocation2 + $0x8] sm:$0xff]
        %v654 = vld [vmem:[#allocation2 + $0x10] sm:$0xff]
        %v655 = vld [vmem:[#allocation2 + $0x18] sm:$0xff]
        %v656 = vld [vmem:[#allocation2 + $0x20] sm:$0xff]
        %v657 = vld [vmem:[#allocation2 + $0x28] sm:$0xff]
        %v658 = vld [vmem:[#allocation2 + $0x30] sm:$0xff]
        %v659 = vld [vmem:[#allocation2 + $0x38] sm:$0xff]
        %v660 = vld [vmem:[#allocation2 + $0x40] sm:$0xff]
        %v661 = vld [vmem:[#allocation2 + $0x48] sm:$0xff]
        %v662 = vld [vmem:[#allocation2 + $0x50] sm:$0xff]
        %v663 = vld [vmem:[#allocation2 + $0x58] sm:$0xff]
        %v664 = vld [vmem:[#allocation2 + $0x60] sm:$0xff]
        %v665 = vld [vmem:[#allocation2 + $0x68] sm:$0xff]
        %v666 = vld [vmem:[#allocation2 + $0x70] sm:$0xff]
        %v667 = vld [vmem:[#allocation2 + $0x78] sm:$0xff]
        %v668 = vld [vmem:[#allocation2 + $0x80] sm:$0xff]
        %v669 = vld [vmem:[#allocation2 + $0x88] sm:$0xff]
        %v670 = vld [vmem:[#allocation2 + $0x90] sm:$0xff]
        %v671 = vld [vmem:[#allocation2 + $0x98] sm:$0xff]
        %v672 = vld [vmem:[#allocation2 + $0xa0] sm:$0xff]
        %v673 = vld [vmem:[#allocation2 + $0xa8] sm:$0xff]
        %v674 = vld [vmem:[#allocation2 + $0xb0] sm:$0xff]
        %v675 = vld [vmem:[#allocation2 + $0xb8] sm:$0xff]
        %v676 = vld [vmem:[#allocation2 + $0xc0] sm:$0xff]
        %v677 = vld [vmem:[#allocation2 + $0xc8] sm:$0xff]
        %v678 = vld [vmem:[#allocation2 + $0xd0] sm:$0xff]
        %v679 = vld [vmem:[#allocation2 + $0xd8] sm:$0xff]
        %v680 = vld [vmem:[#allocation2 + $0xe0] sm:$0xff]
        %v681 = vld [vmem:[#allocation2 + $0xe8] sm:$0xff]
        %v682 = vld [vmem:[#allocation2 + $0xf0] sm:$0xff]
        %v683 = vld [vmem:[#allocation2 + $0xf8] sm:$0xff]
        %v684 = vld [vmem:[%s219] sm:$0xff]
        %v685 = vld [vmem:[%s219 + $0x8] sm:$0xff]
        %v686 = vld [vmem:[%s219 + $0x10] sm:$0xff]
        %v687 = vld [vmem:[%s219 + $0x18] sm:$0xff]
        %v688 = vld [vmem:[%s219 + $0x20] sm:$0xff]
        %v689 = vld [vmem:[%s219 + $0x28] sm:$0xff]
        %v690 = vld [vmem:[%s219 + $0x30] sm:$0xff]
        %v691 = vld [vmem:[%s219 + $0x38] sm:$0xff]
        %v692 = vld [vmem:[%s219 + $0x40] sm:$0xff]
        %v693 = vld [vmem:[%s219 + $0x48] sm:$0xff]
        %v694 = vld [vmem:[%s219 + $0x50] sm:$0xff]
        %v695 = vld [vmem:[%s219 + $0x58] sm:$0xff]
        %v696 = vld [vmem:[%s219 + $0x60] sm:$0xff]
        %v697 = vld [vmem:[%s219 + $0x68] sm:$0xff]
        %v698 = vld [vmem:[%s219 + $0x70] sm:$0xff]
        %v699 = vld [vmem:[%s219 + $0x78] sm:$0xff]
        %v700 = vld [vmem:[%s219 + $0x80] sm:$0xff]
        %v701 = vld [vmem:[%s219 + $0x88] sm:$0xff]
        %v702 = vld [vmem:[%s219 + $0x90] sm:$0xff]
        %v703 = vld [vmem:[%s219 + $0x98] sm:$0xff]
        %v704 = vld [vmem:[%s219 + $0xa0] sm:$0xff]
        %v705 = vld [vmem:[%s219 + $0xa8] sm:$0xff]
        %v706 = vld [vmem:[%s219 + $0xb0] sm:$0xff]
        %v707 = vld [vmem:[%s219 + $0xb8] sm:$0xff]
        %v708 = vld [vmem:[%s219 + $0xc0] sm:$0xff]
        %v709 = vld [vmem:[%s219 + $0xc8] sm:$0xff]
        %v710 = vld [vmem:[%s219 + $0xd0] sm:$0xff]
        %v711 = vld [vmem:[%s219 + $0xd8] sm:$0xff]
        %v712 = vld [vmem:[%s219 + $0xe0] sm:$0xff]
        %v713 = vld [vmem:[%s219 + $0xe8] sm:$0xff]
        %v714 = vld [vmem:[%s219 + $0xf0] sm:$0xff]
        %v715 = vld [vmem:[%s219 + $0xf8] sm:$0xff]
        %v716 = vunpack.c.l.bf16 %v684
        %v717 = vunpack.c.h.bf16 %v684
        %v718 = vunpack.c.l.bf16 %v685
        %v719 = vunpack.c.h.bf16 %v685
        %v720 = vunpack.c.l.bf16 %v686
        %v721 = vunpack.c.h.bf16 %v686
        %v722 = vunpack.c.l.bf16 %v687
        %v723 = vunpack.c.h.bf16 %v687
        %v724 = vunpack.c.l.bf16 %v688
        %v725 = vunpack.c.h.bf16 %v688
        %v726 = vunpack.c.l.bf16 %v689
        %v727 = vunpack.c.h.bf16 %v689
        %v728 = vunpack.c.l.bf16 %v690
        %v729 = vunpack.c.h.bf16 %v690
        %v730 = vunpack.c.l.bf16 %v691
        %v731 = vunpack.c.h.bf16 %v691
        %v732 = vunpack.c.l.bf16 %v692
        %v733 = vunpack.c.h.bf16 %v692
        %v734 = vunpack.c.l.bf16 %v693
        %v735 = vunpack.c.h.bf16 %v693
        %v736 = vunpack.c.l.bf16 %v694
        %v737 = vunpack.c.h.bf16 %v694
        %v738 = vunpack.c.l.bf16 %v695
        %v739 = vunpack.c.h.bf16 %v695
        %v740 = vunpack.c.l.bf16 %v696
        %v741 = vunpack.c.h.bf16 %v696
        %v742 = vunpack.c.l.bf16 %v697
        %v743 = vunpack.c.h.bf16 %v697
        %v744 = vunpack.c.l.bf16 %v698
        %v745 = vunpack.c.h.bf16 %v698
        %v746 = vunpack.c.l.bf16 %v699
        %v747 = vunpack.c.h.bf16 %v699
        %v748 = vunpack.c.l.bf16 %v700
        %v749 = vunpack.c.h.bf16 %v700
        %v750 = vunpack.c.l.bf16 %v701
        %v751 = vunpack.c.h.bf16 %v701
        %v752 = vunpack.c.l.bf16 %v702
        %v753 = vunpack.c.h.bf16 %v702
        %v754 = vunpack.c.l.bf16 %v703
        %v755 = vunpack.c.h.bf16 %v703
        %v756 = vunpack.c.l.bf16 %v704
        %v757 = vunpack.c.h.bf16 %v704
        %v758 = vunpack.c.l.bf16 %v705
        %v759 = vunpack.c.h.bf16 %v705
        %v760 = vunpack.c.l.bf16 %v706
        %v761 = vunpack.c.h.bf16 %v706
        %v762 = vunpack.c.l.bf16 %v707
        %v763 = vunpack.c.h.bf16 %v707
        %v764 = vunpack.c.l.bf16 %v708
        %v765 = vunpack.c.h.bf16 %v708
        %v766 = vunpack.c.l.bf16 %v709
        %v767 = vunpack.c.h.bf16 %v709
        %v768 = vunpack.c.l.bf16 %v710
        %v769 = vunpack.c.h.bf16 %v710
        %v770 = vunpack.c.l.bf16 %v711
        %v771 = vunpack.c.h.bf16 %v711
        %v772 = vunpack.c.l.bf16 %v712
        %v773 = vunpack.c.h.bf16 %v712
        %v774 = vunpack.c.l.bf16 %v713
        %v775 = vunpack.c.h.bf16 %v713
        %v776 = vunpack.c.l.bf16 %v714
        %v777 = vunpack.c.h.bf16 %v714
        %v778 = vunpack.c.l.bf16 %v715
        %v779 = vunpack.c.h.bf16 %v715
        %780 = vmatprep.subr.mxu0 0.0
        %781 = vmatpush1.msra.mxu0 %v494
        %782 = vmatprep.subr.mxu0 0.0
        %783 = vmatpush1.msra.mxu0 %v499
        %784 = vmatprep.subr.mxu0 0.0
        %785 = vmatpush1.msra.mxu0 %v504
        %786 = vmatprep.subr.mxu0 0.0
        %787 = vmatpush1.msra.mxu0 %v509
        %788 = vmatprep.subr.mxu0 0.0
        %789 = vmatpush1.msra.mxu0 %v514
        %790 = vmatprep.subr.mxu0 0.0
        %791 = vmatpush1.msra.mxu0 %v519
        %792 = vmatprep.subr.mxu0 0.0
        %793 = vmatpush1.msra.mxu0 %v524
        %794 = vmatprep.subr.mxu0 0.0
        %795 = vmatpush1.msra.mxu0 %v529
        %796 = vmatprep.subr.mxu0 0.0
        %797 = vmatpush1.msra.mxu0 %v534
        %798 = vmatprep.subr.mxu0 0.0
        %799 = vmatpush1.msra.mxu0 %v539
        %800 = vmatprep.subr.mxu0 0.0
        %801 = vmatpush1.msra.mxu0 %v544
        %802 = vmatprep.subr.mxu0 0.0
        %803 = vmatpush1.msra.mxu0 %v549
        %804 = vmatprep.subr.mxu0 0.0
        %805 = vmatpush1.msra.mxu0 %v554
        %806 = vmatprep.subr.mxu0 0.0
        %807 = vmatpush1.msra.mxu0 %v559
        %808 = vmatprep.subr.mxu0 0.0
        %809 = vmatpush1.msra.mxu0 %v564
        %810 = vmatprep.subr.mxu0 0.0
        %811 = vmatpush1.msra.mxu0 %v569
        %812 = vmatprep.subr.mxu0 0.0
        %813 = vmatpush1.msra.mxu0 %v574
        %814 = vmatprep.subr.mxu0 0.0
        %815 = vmatpush1.msra.mxu0 %v579
        %816 = vmatprep.subr.mxu0 0.0
        %817 = vmatpush1.msra.mxu0 %v584
        %818 = vmatprep.subr.mxu0 0.0
        %819 = vmatpush1.msra.mxu0 %v589
        %820 = vmatprep.subr.mxu0 0.0
        %821 = vmatpush1.msra.mxu0 %v594
        %822 = vmatprep.subr.mxu0 0.0
        %823 = vmatpush1.msra.mxu0 %v599
        %824 = vmatprep.subr.mxu0 0.0
        %825 = vmatpush1.msra.mxu0 %v604
        %826 = vmatprep.subr.mxu0 0.0
        %827 = vmatpush1.msra.mxu0 %v609
        %828 = vmatprep.subr.mxu0 0.0
        %829 = vmatpush1.msra.mxu0 %v614
        %830 = vmatprep.subr.mxu0 0.0
        %831 = vmatpush1.msra.mxu0 %v619
        %832 = vmatprep.subr.mxu0 0.0
        %833 = vmatpush1.msra.mxu0 %v624
        %834 = vmatprep.subr.mxu0 0.0
        %835 = vmatpush1.msra.mxu0 %v629
        %836 = vmatprep.subr.mxu0 0.0
        %837 = vmatpush1.msra.mxu0 %v634
        %838 = vmatprep.subr.mxu0 0.0
        %839 = vmatpush1.msra.mxu0 %v639
        %840 = vmatprep.subr.mxu0 0.0
        %841 = vmatpush1.msra.mxu0 %v644
        %842 = vmatprep.subr.mxu0 0.0
        %843 = vmatpush1.msra.mxu0 %v649
        %844 = vmatprep.mubr.f32.mxu0 %v717
        %845 = vmatmul.mubr.f32.gmra.mrb[0].mxu0 %v716
        %v846 = vpop.f32.mrb[0].mxu0
        %v847 = vadd.f32 0.0, %v846
        %v848 = vpop.f32.mrb[0].mxu0
        %849 = vmatprep.mubr.f32.mxu0 %v719
        %850 = vmatmul.mubr.f32.gmra.mrb[0].mxu0 %v718
        %v851 = vpop.f32.mrb[0].mxu0
        %v852 = vadd.f32 0.0, %v851
        %v853 = vpop.f32.mrb[0].mxu0
        %854 = vmatprep.mubr.f32.mxu0 %v721
        %855 = vmatmul.mubr.f32.gmra.mrb[0].mxu0 %v720
        %v856 = vpop.f32.mrb[0].mxu0
        %v857 = vadd.f32 0.0, %v856
        %v858 = vpop.f32.mrb[0].mxu0
        %859 = vmatprep.mubr.f32.mxu0 %v723
        %860 = vmatmul.mubr.f32.gmra.mrb[0].mxu0 %v722
        %v861 = vpop.f32.mrb[0].mxu0
        %v862 = vadd.f32 0.0, %v861
        %v863 = vpop.f32.mrb[0].mxu0
        %864 = vmatprep.mubr.f32.mxu0 %v725
        %865 = vmatmul.mubr.f32.gmra.mrb[0].mxu0 %v724
        %v866 = vpop.f32.mrb[0].mxu0
        %v867 = vadd.f32 0.0, %v866
        %v868 = vpop.f32.mrb[0].mxu0
        %869 = vmatprep.mubr.f32.mxu0 %v727
        %870 = vmatmul.mubr.f32.gmra.mrb[0].mxu0 %v726
        %v871 = vpop.f32.mrb[0].mxu0
        %v872 = vadd.f32 0.0, %v871
        %v873 = vpop.f32.mrb[0].mxu0
        %874 = vmatprep.mubr.f32.mxu0 %v729
        %875 = vmatmul.mubr.f32.gmra.mrb[0].mxu0 %v728
        %v876 = vpop.f32.mrb[0].mxu0
        %v877 = vadd.f32 0.0, %v876
        %v878 = vpop.f32.mrb[0].mxu0
        %879 = vmatprep.mubr.f32.mxu0 %v731
        %880 = vmatmul.mubr.f32.gmra.mrb[0].mxu0 %v730
        %v881 = vpop.f32.mrb[0].mxu0
        %v882 = vadd.f32 0.0, %v881
        %v883 = vpop.f32.mrb[0].mxu0
        %884 = vmatprep.mubr.f32.mxu0 %v733
        %885 = vmatmul.mubr.f32.gmra.mrb[0].mxu0 %v732
        %v886 = vpop.f32.mrb[0].mxu0
        %v887 = vadd.f32 0.0, %v886
        %v888 = vpop.f32.mrb[0].mxu0
        %889 = vmatprep.mubr.f32.mxu0 %v735
        %890 = vmatmul.mubr.f32.gmra.mrb[0].mxu0 %v734
        %v891 = vpop.f32.mrb[0].mxu0
        %v892 = vadd.f32 0.0, %v891
        %v893 = vpop.f32.mrb[0].mxu0
        %894 = vmatprep.mubr.f32.mxu0 %v737
        %895 = vmatmul.mubr.f32.gmra.mrb[0].mxu0 %v736
        %v896 = vpop.f32.mrb[0].mxu0
        %v897 = vadd.f32 0.0, %v896
        %v898 = vpop.f32.mrb[0].mxu0
        %899 = vmatprep.mubr.f32.mxu0 %v739
        %900 = vmatmul.mubr.f32.gmra.mrb[0].mxu0 %v738
        %v901 = vpop.f32.mrb[0].mxu0
        %v902 = vadd.f32 0.0, %v901
        %v903 = vpop.f32.mrb[0].mxu0
        %904 = vmatprep.mubr.f32.mxu0 %v741
        %905 = vmatmul.mubr.f32.gmra.mrb[0].mxu0 %v740
        %v906 = vpop.f32.mrb[0].mxu0
        %v907 = vadd.f32 0.0, %v906
        %v908 = vpop.f32.mrb[0].mxu0
        %909 = vmatprep.mubr.f32.mxu0 %v743
        %910 = vmatmul.mubr.f32.gmra.mrb[0].mxu0 %v742
        %v911 = vpop.f32.mrb[0].mxu0
        %v912 = vadd.f32 0.0, %v911
        %v913 = vpop.f32.mrb[0].mxu0
        %914 = vmatprep.mubr.f32.mxu0 %v745
        %915 = vmatmul.mubr.f32.gmra.mrb[0].mxu0 %v744
        %v916 = vpop.f32.mrb[0].mxu0
        %v917 = vadd.f32 0.0, %v916
        %v918 = vpop.f32.mrb[0].mxu0
        %919 = vmatprep.mubr.f32.mxu0 %v747
        %920 = vmatmul.mubr.f32.gmra.mrb[0].mxu0 %v746
        %v921 = vpop.f32.mrb[0].mxu0
        %v922 = vadd.f32 0.0, %v921
        %v923 = vpop.f32.mrb[0].mxu0
        %924 = vmatprep.mubr.f32.mxu0 %v749
        %925 = vmatmul.mubr.f32.gmra.mrb[0].mxu0 %v748
        %v926 = vpop.f32.mrb[0].mxu0
        %v927 = vadd.f32 0.0, %v926
        %v928 = vpop.f32.mrb[0].mxu0
        %929 = vmatprep.mubr.f32.mxu0 %v751
        %930 = vmatmul.mubr.f32.gmra.mrb[0].mxu0 %v750
        %v931 = vpop.f32.mrb[0].mxu0
        %v932 = vadd.f32 0.0, %v931
        %v933 = vpop.f32.mrb[0].mxu0
        %934 = vmatprep.mubr.f32.mxu0 %v753
        %935 = vmatmul.mubr.f32.gmra.mrb[0].mxu0 %v752
        %v936 = vpop.f32.mrb[0].mxu0
        %v937 = vadd.f32 0.0, %v936
        %v938 = vpop.f32.mrb[0].mxu0
        %939 = vmatprep.mubr.f32.mxu0 %v755
        %940 = vmatmul.mubr.f32.gmra.mrb[0].mxu0 %v754
        %v941 = vpop.f32.mrb[0].mxu0
        %v942 = vadd.f32 0.0, %v941
        %v943 = vpop.f32.mrb[0].mxu0
        %944 = vmatprep.mubr.f32.mxu0 %v757
        %945 = vmatmul.mubr.f32.gmra.mrb[0].mxu0 %v756
        %v946 = vpop.f32.mrb[0].mxu0
        %v947 = vadd.f32 0.0, %v946
        %v948 = vpop.f32.mrb[0].mxu0
        %949 = vmatprep.mubr.f32.mxu0 %v759
        %950 = vmatmul.mubr.f32.gmra.mrb[0].mxu0 %v758
        %v951 = vpop.f32.mrb[0].mxu0
        %v952 = vadd.f32 0.0, %v951
        %v953 = vpop.f32.mrb[0].mxu0
        %954 = vmatprep.mubr.f32.mxu0 %v761
        %955 = vmatmul.mubr.f32.gmra.mrb[0].mxu0 %v760
        %v956 = vpop.f32.mrb[0].mxu0
        %v957 = vadd.f32 0.0, %v956
        %v958 = vpop.f32.mrb[0].mxu0
        %959 = vmatprep.mubr.f32.mxu0 %v763
        %960 = vmatmul.mubr.f32.gmra.mrb[0].mxu0 %v762
        %v961 = vpop.f32.mrb[0].mxu0
        %v962 = vadd.f32 0.0, %v961
        %v963 = vpop.f32.mrb[0].mxu0
        %964 = vmatprep.mubr.f32.mxu0 %v765
        %965 = vmatmul.mubr.f32.gmra.mrb[0].mxu0 %v764
        %v966 = vpop.f32.mrb[0].mxu0
        %v967 = vadd.f32 0.0, %v966
        %v968 = vpop.f32.mrb[0].mxu0
        %969 = vmatprep.mubr.f32.mxu0 %v767
        %970 = vmatmul.mubr.f32.gmra.mrb[0].mxu0 %v766
        %v971 = vpop.f32.mrb[0].mxu0
        %v972 = vadd.f32 0.0, %v971
        %v973 = vpop.f32.mrb[0].mxu0
        %974 = vmatprep.mubr.f32.mxu0 %v769
        %975 = vmatmul.mubr.f32.gmra.mrb[0].mxu0 %v768
        %v976 = vpop.f32.mrb[0].mxu0
        %v977 = vadd.f32 0.0, %v976
        %v978 = vpop.f32.mrb[0].mxu0
        %979 = vmatprep.mubr.f32.mxu0 %v771
        %980 = vmatmul.mubr.f32.gmra.mrb[0].mxu0 %v770
        %v981 = vpop.f32.mrb[0].mxu0
        %v982 = vadd.f32 0.0, %v981
        %v983 = vpop.f32.mrb[0].mxu0
        %984 = vmatprep.mubr.f32.mxu0 %v773
        %985 = vmatmul.mubr.f32.gmra.mrb[0].mxu0 %v772
        %v986 = vpop.f32.mrb[0].mxu0
        %v987 = vadd.f32 0.0, %v986
        %v988 = vpop.f32.mrb[0].mxu0
        %989 = vmatprep.mubr.f32.mxu0 %v775
        %990 = vmatmul.mubr.f32.gmra.mrb[0].mxu0 %v774
        %v991 = vpop.f32.mrb[0].mxu0
        %v992 = vadd.f32 0.0, %v991
        %v993 = vpop.f32.mrb[0].mxu0
        %994 = vmatprep.mubr.f32.mxu0 %v777
        %995 = vmatmul.mubr.f32.gmra.mrb[0].mxu0 %v776
        %v996 = vpop.f32.mrb[0].mxu0
        %v997 = vadd.f32 0.0, %v996
        %v998 = vpop.f32.mrb[0].mxu0
        %999 = vmatprep.mubr.f32.mxu0 %v779
        %1000 = vmatmul.mubr.f32.gmra.mrb[0].mxu0 %v778
        %v1001 = vpop.f32.mrb[0].mxu0
        %v1002 = vadd.f32 0.0, %v1001
        %v1003 = vpop.f32.mrb[0].mxu0
        %1004 = vdwg.mxu0
        %v1005 = vadd.f32 %v652, %v847
        %v1006 = vadd.f32 %v653, %v852
        %v1007 = vadd.f32 %v654, %v857
        %v1008 = vadd.f32 %v655, %v862
        %v1009 = vadd.f32 %v656, %v867
        %v1010 = vadd.f32 %v657, %v872
        %v1011 = vadd.f32 %v658, %v877
        %v1012 = vadd.f32 %v659, %v882
        %v1013 = vadd.f32 %v660, %v887
        %v1014 = vadd.f32 %v661, %v892
        %v1015 = vadd.f32 %v662, %v897
        %v1016 = vadd.f32 %v663, %v902
        %v1017 = vadd.f32 %v664, %v907
        %v1018 = vadd.f32 %v665, %v912
        %v1019 = vadd.f32 %v666, %v917
        %v1020 = vadd.f32 %v667, %v922
        %v1021 = vadd.f32 %v668, %v927
        %v1022 = vadd.f32 %v669, %v932
        %v1023 = vadd.f32 %v670, %v937
        %v1024 = vadd.f32 %v671, %v942
        %v1025 = vadd.f32 %v672, %v947
        %v1026 = vadd.f32 %v673, %v952
        %v1027 = vadd.f32 %v674, %v957
        %v1028 = vadd.f32 %v675, %v962
        %v1029 = vadd.f32 %v676, %v967
        %v1030 = vadd.f32 %v677, %v972
        %v1031 = vadd.f32 %v678, %v977
        %v1032 = vadd.f32 %v679, %v982
        %v1033 = vadd.f32 %v680, %v987
        %v1034 = vadd.f32 %v681, %v992
        %v1035 = vadd.f32 %v682, %v997
        %v1036 = vadd.f32 %v683, %v1002
        %1037 = vst [vmem:[#allocation2] sm:$0xff] %v1005
        %1038 = vst [vmem:[#allocation2 + $0x8] sm:$0xff] %v1006
        %1039 = vst [vmem:[#allocation2 + $0x10] sm:$0xff] %v1007
        %1040 = vst [vmem:[#allocation2 + $0x18] sm:$0xff] %v1008
        %1041 = vst [vmem:[#allocation2 + $0x20] sm:$0xff] %v1009
        %1042 = vst [vmem:[#allocation2 + $0x28] sm:$0xff] %v1010
        %1043 = vst [vmem:[#allocation2 + $0x30] sm:$0xff] %v1011
        %1044 = vst [vmem:[#allocation2 + $0x38] sm:$0xff] %v1012
        %1045 = vst [vmem:[#allocation2 + $0x40] sm:$0xff] %v1013
        %1046 = vst [vmem:[#allocation2 + $0x48] sm:$0xff] %v1014
        %1047 = vst [vmem:[#allocation2 + $0x50] sm:$0xff] %v1015
        %1048 = vst [vmem:[#allocation2 + $0x58] sm:$0xff] %v1016
        %1049 = vst [vmem:[#allocation2 + $0x60] sm:$0xff] %v1017
        %1050 = vst [vmem:[#allocation2 + $0x68] sm:$0xff] %v1018
        %1051 = vst [vmem:[#allocation2 + $0x70] sm:$0xff] %v1019
        %1052 = vst [vmem:[#allocation2 + $0x78] sm:$0xff] %v1020
        %1053 = vst [vmem:[#allocation2 + $0x80] sm:$0xff] %v1021
        %1054 = vst [vmem:[#allocation2 + $0x88] sm:$0xff] %v1022
        %1055 = vst [vmem:[#allocation2 + $0x90] sm:$0xff] %v1023
        %1056 = vst [vmem:[#allocation2 + $0x98] sm:$0xff] %v1024
        %1057 = vst [vmem:[#allocation2 + $0xa0] sm:$0xff] %v1025
        %1058 = vst [vmem:[#allocation2 + $0xa8] sm:$0xff] %v1026
        %1059 = vst [vmem:[#allocation2 + $0xb0] sm:$0xff] %v1027
        %1060 = vst [vmem:[#allocation2 + $0xb8] sm:$0xff] %v1028
        %1061 = vst [vmem:[#allocation2 + $0xc0] sm:$0xff] %v1029
        %1062 = vst [vmem:[#allocation2 + $0xc8] sm:$0xff] %v1030
        %1063 = vst [vmem:[#allocation2 + $0xd0] sm:$0xff] %v1031
        %1064 = vst [vmem:[#allocation2 + $0xd8] sm:$0xff] %v1032
        %1065 = vst [vmem:[#allocation2 + $0xe0] sm:$0xff] %v1033
        %1066 = vst [vmem:[#allocation2 + $0xe8] sm:$0xff] %v1034
        %1067 = vst [vmem:[#allocation2 + $0xf0] sm:$0xff] %v1035
        %1068 = vst [vmem:[#allocation2 + $0xf8] sm:$0xff] %v1036
        %p1069 = scmp.eq.s32.totalorder %s26, 1
        // Predicated region
        $region45: #{tpu_custom_call.1} parent=35 // pred_check
          %p1070 = pneg %p1069
        $region46: #{tpu_custom_call.1} parent=35 // pred_check_branch
          %1072 = sbr.rel (%p1070) target = $region48
        $region47: #{tpu_custom_call.1} parent=35 // pred_region
          %v1073 = vld [vmem:[#allocation2] sm:$0xff]
          %v1074 = vld [vmem:[#allocation2 + $0x8] sm:$0xff]
          %v1075 = vld [vmem:[#allocation2 + $0x10] sm:$0xff]
          %v1076 = vld [vmem:[#allocation2 + $0x18] sm:$0xff]
          %v1077 = vld [vmem:[#allocation2 + $0x20] sm:$0xff]
          %v1078 = vld [vmem:[#allocation2 + $0x28] sm:$0xff]
          %v1079 = vld [vmem:[#allocation2 + $0x30] sm:$0xff]
          %v1080 = vld [vmem:[#allocation2 + $0x38] sm:$0xff]
          %v1081 = vld [vmem:[#allocation2 + $0x40] sm:$0xff]
          %v1082 = vld [vmem:[#allocation2 + $0x48] sm:$0xff]
          %v1083 = vld [vmem:[#allocation2 + $0x50] sm:$0xff]
          %v1084 = vld [vmem:[#allocation2 + $0x58] sm:$0xff]
          %v1085 = vld [vmem:[#allocation2 + $0x60] sm:$0xff]
          %v1086 = vld [vmem:[#allocation2 + $0x68] sm:$0xff]
          %v1087 = vld [vmem:[#allocation2 + $0x70] sm:$0xff]
          %v1088 = vld [vmem:[#allocation2 + $0x78] sm:$0xff]
          %v1089 = vld [vmem:[#allocation2 + $0x80] sm:$0xff]
          %v1090 = vld [vmem:[#allocation2 + $0x88] sm:$0xff]
          %v1091 = vld [vmem:[#allocation2 + $0x90] sm:$0xff]
          %v1092 = vld [vmem:[#allocation2 + $0x98] sm:$0xff]
          %v1093 = vld [vmem:[#allocation2 + $0xa0] sm:$0xff]
          %v1094 = vld [vmem:[#allocation2 + $0xa8] sm:$0xff]
          %v1095 = vld [vmem:[#allocation2 + $0xb0] sm:$0xff]
          %v1096 = vld [vmem:[#allocation2 + $0xb8] sm:$0xff]
          %v1097 = vld [vmem:[#allocation2 + $0xc0] sm:$0xff]
          %v1098 = vld [vmem:[#allocation2 + $0xc8] sm:$0xff]
          %v1099 = vld [vmem:[#allocation2 + $0xd0] sm:$0xff]
          %v1100 = vld [vmem:[#allocation2 + $0xd8] sm:$0xff]
          %v1101 = vld [vmem:[#allocation2 + $0xe0] sm:$0xff]
          %v1102 = vld [vmem:[#allocation2 + $0xe8] sm:$0xff]
          %v1103 = vld [vmem:[#allocation2 + $0xf0] sm:$0xff]
          %v1104 = vld [vmem:[#allocation2 + $0xf8] sm:$0xff]
          %v1105 = vld [vmem:[%s3] sm:$0x1]
          %v1107 = vlaneseq
          %v1108 = vshrl.u32 %v1107, 7
          %v1109 = vsub.s32 0, %v1108
          %v1110 = vrot.slane %v1105, %v1109
          %v1112 = vadd.f32 %v1073, %v1110
          %v1113 = vadd.f32 %v1074, %v1110
          %v1114 = vadd.f32 %v1075, %v1110
          %v1115 = vadd.f32 %v1076, %v1110
          %v1116 = vadd.f32 %v1077, %v1110
          %v1117 = vadd.f32 %v1078, %v1110
          %v1118 = vadd.f32 %v1079, %v1110
          %v1119 = vadd.f32 %v1080, %v1110
          %v1120 = vadd.f32 %v1081, %v1110
          %v1121 = vadd.f32 %v1082, %v1110
          %v1122 = vadd.f32 %v1083, %v1110
          %v1123 = vadd.f32 %v1084, %v1110
          %v1124 = vadd.f32 %v1085, %v1110
          %v1125 = vadd.f32 %v1086, %v1110
          %v1126 = vadd.f32 %v1087, %v1110
          %v1127 = vadd.f32 %v1088, %v1110
          %v1128 = vadd.f32 %v1089, %v1110
          %v1129 = vadd.f32 %v1090, %v1110
          %v1130 = vadd.f32 %v1091, %v1110
          %v1131 = vadd.f32 %v1092, %v1110
          %v1132 = vadd.f32 %v1093, %v1110
          %v1133 = vadd.f32 %v1094, %v1110
          %v1134 = vadd.f32 %v1095, %v1110
          %v1135 = vadd.f32 %v1096, %v1110
          %v1136 = vadd.f32 %v1097, %v1110
          %v1137 = vadd.f32 %v1098, %v1110
          %v1138 = vadd.f32 %v1099, %v1110
          %v1139 = vadd.f32 %v1100, %v1110
          %v1140 = vadd.f32 %v1101, %v1110
          %v1141 = vadd.f32 %v1102, %v1110
          %v1142 = vadd.f32 %v1103, %v1110
          %v1143 = vadd.f32 %v1104, %v1110
          %1144 = vst [vmem:[%s248] sm:$0xff] %v1112
          %1145 = vst [vmem:[%s248 + $0x8] sm:$0xff] %v1113
          %1146 = vst [vmem:[%s248 + $0x10] sm:$0xff] %v1114
          %1147 = vst [vmem:[%s248 + $0x18] sm:$0xff] %v1115
          %1148 = vst [vmem:[%s248 + $0x20] sm:$0xff] %v1116
          %1149 = vst [vmem:[%s248 + $0x28] sm:$0xff] %v1117
          %1150 = vst [vmem:[%s248 + $0x30] sm:$0xff] %v1118
          %1151 = vst [vmem:[%s248 + $0x38] sm:$0xff] %v1119
          %1152 = vst [vmem:[%s248 + $0x40] sm:$0xff] %v1120
          %1153 = vst [vmem:[%s248 + $0x48] sm:$0xff] %v1121
          %1154 = vst [vmem:[%s248 + $0x50] sm:$0xff] %v1122
          %1155 = vst [vmem:[%s248 + $0x58] sm:$0xff] %v1123
          %1156 = vst [vmem:[%s248 + $0x60] sm:$0xff] %v1124
          %1157 = vst [vmem:[%s248 + $0x68] sm:$0xff] %v1125
          %1158 = vst [vmem:[%s248 + $0x70] sm:$0xff] %v1126
          %1159 = vst [vmem:[%s248 + $0x78] sm:$0xff] %v1127
          %1160 = vst [vmem:[%s248 + $0x80] sm:$0xff] %v1128
          %1161 = vst [vmem:[%s248 + $0x88] sm:$0xff] %v1129
          %1162 = vst [vmem:[%s248 + $0x90] sm:$0xff] %v1130
          %1163 = vst [vmem:[%s248 + $0x98] sm:$0xff] %v1131
          %1164 = vst [vmem:[%s248 + $0xa0] sm:$0xff] %v1132
          %1165 = vst [vmem:[%s248 + $0xa8] sm:$0xff] %v1133
          %1166 = vst [vmem:[%s248 + $0xb0] sm:$0xff] %v1134
          %1167 = vst [vmem:[%s248 + $0xb8] sm:$0xff] %v1135
          %1168 = vst [vmem:[%s248 + $0xc0] sm:$0xff] %v1136
          %1169 = vst [vmem:[%s248 + $0xc8] sm:$0xff] %v1137
          %1170 = vst [vmem:[%s248 + $0xd0] sm:$0xff] %v1138
          %1171 = vst [vmem:[%s248 + $0xd8] sm:$0xff] %v1139
          %1172 = vst [vmem:[%s248 + $0xe0] sm:$0xff] %v1140
          %1173 = vst [vmem:[%s248 + $0xe8] sm:$0xff] %v1141
          %1174 = vst [vmem:[%s248 + $0xf0] sm:$0xff] %v1142
          %1175 = vst [vmem:[%s248 + $0xf8] sm:$0xff] %v1143
        $region48: #{tpu_custom_call.1} parent=35 // pred_fallthru
          _
        %s1176 = sand.u32 %s137, 1
        %s1177 = scalar_lea.sflag [#allocation5], %s1176
        %s1178 = sand.u32 %s137, 1
        %s1179 = smul.addr %s1178, 256
        %s1180 = scalar_lea.vmem [#allocation6], %s1179
        // Predicated region
        $region49: #{tpu_custom_call.1} parent=35 // pred_check
          %p1181 = pneg %p147
        $region50: #{tpu_custom_call.1} parent=35 // pred_check_branch
          %1183 = sbr.rel (%p1181) target = $region52
        $region51: #{tpu_custom_call.1} parent=35 // pred_region
          %s1184 = smul.u32 32, %s25
          %s1186 = ssub.s32 4096, 4096
          %1187 = vsyncadd %s1177, %s1186
          %s1188 = smul.addr %s1184, 128
          %s1189 = scalar_lea.hbm %s4, %s1188
          %s1190 = sshll.u32 %s1180, 4
          %s1191 = int_to_ptr.vmem [resolvable:$true] %s1190
          %1196 = dma.vmem_to_hbm [thread:$0]  %s1191, 4096, %s1189, %s1177, 128, 128, 8
        $region52: #{tpu_custom_call.1} parent=35 // pred_fallthru
          _
      $region36: #{tpu_custom_call.1} parent=5 // pred_fallthru
        _
      %p1197 = scmp.le.s32.totalorder 2, %s16
      // Predicated region
      $region53: #{tpu_custom_call.1} parent=5 // pred_check
        %p1198 = pneg %p1197
      $region54: #{tpu_custom_call.1} parent=5 // pred_check_branch
        %1200 = sbr.rel (%p1198) target = $region56
      $region55: #{tpu_custom_call.1} parent=5 // pred_region
        %s1201 = ssub.s32 %s16, 2
        // Predicated region
        $region57: #{tpu_custom_call.1} parent=55 // pred_check
          %p1202 = pneg %p153
        $region58: #{tpu_custom_call.1} parent=55 // pred_check_branch
          %1204 = sbr.rel (%p1202) target = $region60
        $region59: #{tpu_custom_call.1} parent=55 // pred_region
          %s1205 = sand.u32 %s138, 1
          %s1206 = scalar_lea.sflag [#allocation5], %s1205
          %s1207 = sand.u32 %s138, 1
          %s1208 = smul.addr %s1207, 256
          %s1209 = scalar_lea.vmem [#allocation6], %s1208
          %1210 = dma.done %s1206, 4096
        $region60: #{tpu_custom_call.1} parent=55 // pred_fallthru
          _
      $region56: #{tpu_custom_call.1} parent=5 // pred_fallthru
        _
    $region6: #{tpu_custom_call.1} parent=1 // loop_footer
      %s20 = sadd.s32 1, %s16
    $region7: #{tpu_custom_call.1} parent=1 // loop_footer_branch
      %15 = sbr.rel target = $region3
    $region8: #{tpu_custom_call.1} parent=1 // loop_exit
      _
    %1211 = vsyncpa [#allocation4], 1
    %s1212 = scalar_lea.sflag [#allocation4], 1
    %1213 = vsyncpa %s1212, 1
    %1214 = vsyncpa [#allocation5], 1
    %s1215 = scalar_lea.sflag [#allocation5], 1
    %1216 = vsyncpa %s1215, 1

</llo_original>
